<compile_context>
chip_gen: v6e
topology: v6e:2x2x1
jax: 0.10.0
libtpu: 0.0.40
codegen_flags: <defaults>
</compile_context>

<pallas_src>
import math
import functools

import jax
import jax.numpy as jnp
from jax import lax
from jax.experimental import pallas as pl
from jax.experimental.pallas import tpu as pltpu

NEG_INF = -1e30                 # additive mask value (exp underflows to 0)
LN_EPS = 1e-5
MXU_DTYPE = jnp.bfloat16        # MXU operands / weight storage; accum stays f32

# Target tile sizes (fall back to the full dim when it does not divide evenly —
# at the demo shapes everything is a single block, at real sizes they tile).
TM, TN, TK = 256, 256, 512      # generic matmul tiles
TQ = 256                        # attention query tile
TN_LOSS = 512                   # loss row tile (bigger => less (V,D) re-streaming)
TV = 512                        # loss vocab tile


def _round_up(x, m):
    return ((x + m - 1) // m) * m


def _fit(dim, target):
    """`target` if it evenly divides `dim` (and dim > target), else full dim."""
    return target if (dim > target and dim % target == 0) else dim


@functools.lru_cache(maxsize=None)
def _vmem_limit_bytes():
    """Generation-aware VMEM budget: ~48 MiB on v7x (64 MiB), ~96 MiB on v5e/v6e."""
    cap = 64 * 1024 * 1024
    try:
        v = getattr(pltpu.get_tpu_info(), "vmem_capacity_bytes", None)
        if v:
            cap = int(v)
    except Exception:
        pass
    return int(min(cap * 3 // 4, 100 * 1024 * 1024))


def _cparams(semantics):
    return pltpu.CompilerParams(dimension_semantics=semantics,
                                vmem_limit_bytes=_vmem_limit_bytes())


# ----------------------------------------------------------------------------
# Tiled linear (fused QKV / Q / KV projections) -> bf16 output for attention
# ----------------------------------------------------------------------------
def _matmul_kernel(x_ref, w_ref, b_ref, o_ref, acc_ref):
    @pl.when(pl.program_id(2) == 0)
    def _():
        acc_ref[...] = jnp.zeros_like(acc_ref)

    acc_ref[...] += jnp.dot(x_ref[...].astype(MXU_DTYPE), w_ref[...],
                            preferred_element_type=jnp.float32)

    @pl.when(pl.program_id(2) == pl.num_programs(2) - 1)
    def _():
        o_ref[...] = (acc_ref[...] + b_ref[...]).astype(o_ref.dtype)


def linear(x, w, b):
    """x:(M,K) f32 @ w:(K,N) bf16 + b:(N,) -> (M,N) bf16 (attention operand)."""
    M, K = x.shape
    N = w.shape[1]
    tm, tn, tk = _fit(M, TM), _fit(N, TN), _fit(K, TK)
    return pl.pallas_call(
        _matmul_kernel,
        out_shape=jax.ShapeDtypeStruct((M, N), MXU_DTYPE),
        grid=(M // tm, N // tn, K // tk),
        in_specs=[
            pl.BlockSpec((tm, tk), lambda i, j, k: (i, k)),
            pl.BlockSpec((tk, tn), lambda i, j, k: (k, j)),
            pl.BlockSpec((1, tn), lambda i, j, k: (0, j)),
        ],
        out_specs=pl.BlockSpec((tm, tn), lambda i, j, k: (i, j)),
        scratch_shapes=[pltpu.VMEM((tm, tn), jnp.float32)],
        compiler_params=_cparams(("parallel", "parallel", "arbitrary")),
    )(x, w, b.reshape(1, N))


# ----------------------------------------------------------------------------
# Fused sub-layer epilogues
# ----------------------------------------------------------------------------
def _layer_norm(x, g, b):
    mu = jnp.mean(x, axis=-1, keepdims=True)
    var = jnp.maximum(jnp.mean(x * x, axis=-1, keepdims=True) - mu * mu, 0.0)
    return (x - mu) * lax.rsqrt(var + LN_EPS) * g + b


def _proj_res_ln_kernel(a_ref, w_ref, b_ref, r_ref, g_ref, beta_ref, o_ref):
    y = jnp.dot(a_ref[...], w_ref[...],
                preferred_element_type=jnp.float32) + b_ref[...]
    o_ref[...] = _layer_norm(r_ref[...] + y, g_ref[...], beta_ref[...])


def proj_residual_ln(a, w, b, resid, ln):
    """LayerNorm(resid + a @ w + b) fused. a: (M,D) bf16, resid: (M,D) f32."""
    M, D = a.shape
    tm = _fit(M, TM)
    return pl.pallas_call(
        _proj_res_ln_kernel,
        out_shape=jax.ShapeDtypeStruct((M, D), jnp.float32),
        grid=(M // tm,),
        in_specs=[
            pl.BlockSpec((tm, D), lambda i: (i, 0)),
            pl.BlockSpec((D, D), lambda i: (0, 0)),
            pl.BlockSpec((1, D), lambda i: (0, 0)),
            pl.BlockSpec((tm, D), lambda i: (i, 0)),
            pl.BlockSpec((1, D), lambda i: (0, 0)),
            pl.BlockSpec((1, D), lambda i: (0, 0)),
        ],
        out_specs=pl.BlockSpec((tm, D), lambda i: (i, 0)),
        compiler_params=_cparams(("parallel",)),
    )(a, w, b.reshape(1, D), resid, ln["g"].reshape(1, D), ln["b"].reshape(1, D))


def _ffn_ln_kernel(x_ref, w1_ref, b1_ref, w2_ref, b2_ref, g_ref, beta_ref,
                   o_ref, acc_ref):
    k = pl.program_id(1)

    @pl.when(k == 0)
    def _():
        acc_ref[...] = jnp.zeros_like(acc_ref)

    x = x_ref[...]
    h = jnp.dot(x.astype(MXU_DTYPE), w1_ref[...],
                preferred_element_type=jnp.float32) + b1_ref[...]
    # TODO(synk): reference FFN activation unspecified; tanh-approx GELU assumed.
    h = jax.nn.gelu(h, approximate=True)
    acc_ref[...] += jnp.dot(h.astype(MXU_DTYPE), w2_ref[...],
                            preferred_element_type=jnp.float32)

    @pl.when(k == pl.num_programs(1) - 1)
    def _():
        o_ref[...] = _layer_norm(x + acc_ref[...] + b2_ref[...],
                                 g_ref[...], beta_ref[...])


def ffn_ln(x, w1, b1, w2, b2, ln):
    """LayerNorm(x + fc2(gelu(fc1(x)))) fused, hidden dim streamed in F-chunks."""
    M, D = x.shape
    F = w1.shape[1]
    tm = _fit(M, TM)
    tf = _fit(F, TK)
    return pl.pallas_call(
        _ffn_ln_kernel,
        out_shape=jax.ShapeDtypeStruct((M, D), jnp.float32),
        grid=(M // tm, F // tf),
        in_specs=[
            pl.BlockSpec((tm, D), lambda i, k: (i, 0)),
            pl.BlockSpec((D, tf), lambda i, k: (0, k)),
            pl.BlockSpec((1, tf), lambda i, k: (0, k)),
            pl.BlockSpec((tf, D), lambda i, k: (k, 0)),
            pl.BlockSpec((1, D), lambda i, k: (0, 0)),
            pl.BlockSpec((1, D), lambda i, k: (0, 0)),
            pl.BlockSpec((1, D), lambda i, k: (0, 0)),
        ],
        out_specs=pl.BlockSpec((tm, D), lambda i, k: (i, 0)),
        scratch_shapes=[pltpu.VMEM((tm, D), jnp.float32)],
        compiler_params=_cparams(("parallel", "arbitrary")),
    )(x, w1, b1.reshape(1, F), w2, b2.reshape(1, D),
      ln["g"].reshape(1, D), ln["b"].reshape(1, D))


# ----------------------------------------------------------------------------
# Attention: grid=(batch, query tile), in-kernel bias, per-head slice stores
# ----------------------------------------------------------------------------
def _attn_heads(q, k, v, bias, o_ref, *, num_heads, scale):
    """q:(tq,D), k/v:(S,D) bf16; bias additive f32; heads written to o_ref."""
    # TODO(synk): per-head MXU contraction is only dh-wide; batched-head
    # dot_general (H,T,dh)x(H,S,dh) left for a later revision.
    D = q.shape[-1]
    dh = D // num_heads
    for h in range(num_heads):
        sl = slice(h * dh, (h + 1) * dh)
        s = lax.dot_general(q[:, sl], k[:, sl], (((1,), (1,)), ((), ())),
                            preferred_element_type=jnp.float32) * scale + bias
        m = jnp.max(s, axis=-1, keepdims=True)
        p = jnp.exp(s - m)
        inv = pl.reciprocal(jnp.sum(p, axis=-1, keepdims=True), approx=True)
        oh = jnp.dot(p.astype(MXU_DTYPE), v[:, sl],
                     preferred_element_type=jnp.float32) * inv
        o_ref[:, sl] = oh.astype(o_ref.dtype)


def _self_attn_kernel(qkv_ref, bias_ref, o_ref, *, num_heads, scale, causal,
                      embed_dim, tq):
    D = embed_dim
    kv = qkv_ref[...]                         # (S, 3D) bf16, resident over q-tiles
    S = kv.shape[0]
    q0 = pl.multiple_of(pl.program_id(1) * tq, tq)
    q = qkv_ref[pl.ds(q0, tq), :]             # (tq, 3D)
    bias = bias_ref[...]                      # (1, S) additive pad mask
    if causal:
        qpos = q0 + lax.broadcasted_iota(jnp.int32, (tq, S), 0)
        kpos = lax.broadcasted_iota(jnp.int32, (tq, S), 1)
        bias = bias + jnp.where(kpos > qpos, NEG_INF, 0.0)
    _attn_heads(q[:, :D], kv[:, D:2 * D], kv[:, 2 * D:], bias, o_ref,
                num_heads=num_heads, scale=scale)


def _cross_attn_kernel(q_ref, kv_ref, bias_ref, o_ref, *, num_heads, scale,
                       embed_dim):
    D = embed_dim
    kv = kv_ref[...]                          # (S, 2D) bf16
    _attn_heads(q_ref[...], kv[:, :D], kv[:, D:], bias_ref[...], o_ref,
                num_heads=num_heads, scale=scale)


def self_attention(qkv, key_bias, *, num_heads, causal):
    """qkv: (B, T, 3D) bf16; key_bias: (B, 1, T) additive -> (B, T, D) bf16."""
    B, T, D3 = qkv.shape
    D = D3 // 3
    dh = D // num_heads
    tq = _fit(T, TQ)
    return pl.pallas_call(
        functools.partial(_self_attn_kernel, num_heads=num_heads,
                          scale=dh ** -0.5, causal=causal, embed_dim=D, tq=tq),
        out_shape=jax.ShapeDtypeStruct((B, T, D), MXU_DTYPE),
        grid=(B, T // tq),
        in_specs=[
            pl.BlockSpec((None, T, D3), lambda b, qi: (b, 0, 0)),
            pl.BlockSpec((None, 1, T), lambda b, qi: (b, 0, 0)),
        ],
        out_specs=pl.BlockSpec((None, tq, D), lambda b, qi: (b, qi, 0)),
        compiler_params=_cparams(("parallel", "parallel")),
    )(qkv, key_bias)


def cross_attention(q, kv, key_bias, *, num_heads):
    """q: (B,T,D) bf16; kv: (B,S,2D) bf16; key_bias: (B,1,S) -> (B,T,D) bf16."""
    B, T, D = q.shape
    S = kv.shape[1]
    dh = D // num_heads
    tq = _fit(T, TQ)
    return pl.pallas_call(
        functools.partial(_cross_attn_kernel, num_heads=num_heads,
                          scale=dh ** -0.5, embed_dim=D),
        out_shape=jax.ShapeDtypeStruct((B, T, D), MXU_DTYPE),
        grid=(B, T // tq),
        in_specs=[
            pl.BlockSpec((None, tq, D), lambda b, qi: (b, qi, 0)),
            pl.BlockSpec((None, S, 2 * D), lambda b, qi: (b, 0, 0)),
            pl.BlockSpec((None, 1, S), lambda b, qi: (b, 0, 0)),
        ],
        out_specs=pl.BlockSpec((None, tq, D), lambda b, qi: (b, qi, 0)),
        compiler_params=_cparams(("parallel", "parallel")),
    )(q, kv, key_bias)


# ----------------------------------------------------------------------------
# Fused tied-output-projection + label-smoothed NLL loss
# (rows "parallel" for megacore, vocab chunks "arbitrary" with online
#  logsumexp + running argmax; per-row partials reduced in plain JAX)
# ----------------------------------------------------------------------------
def _loss_kernel(x_ref, w_ref, tgt_ref, nll_ref, smooth_ref, acc_ref,
                 m_run, s_run, logsum_run, tgt_logit, arg_run,
                 *, pad_idx, vocab, tv):
    j = pl.program_id(1)
    nj = pl.num_programs(1)

    @pl.when(j == 0)
    def _():
        m_run[...] = jnp.full_like(m_run, -jnp.inf)
        s_run[...] = jnp.zeros_like(s_run)
        logsum_run[...] = jnp.zeros_like(logsum_run)
        tgt_logit[...] = jnp.zeros_like(tgt_logit)
        arg_run[...] = jnp.full_like(arg_run, -1.0)

    # Tied projection chunk: contract (tn, D) with (tv, D) along D.
    logits = lax.dot_general(x_ref[...].astype(MXU_DTYPE), w_ref[...],
                             (((1,), (1,)), ((), ())),
                             preferred_element_type=jnp.float32)   # (tn, tv)
    tgt = tgt_ref[...]                                             # (tn, 1) int32
    col = j * tv + lax.broadcasted_iota(jnp.int32, logits.shape, 1)
    valid = col < vocab                                            # mask padded vocab
    lmask = jnp.where(valid, logits, NEG_INF)

    chunk_max = jnp.max(lmask, axis=-1, keepdims=True)
    colf = col.astype(jnp.float32)
    chunk_arg = jnp.min(jnp.where(lmask == chunk_max, colf, jnp.float32(1e30)),
                        axis=-1, keepdims=True)                    # first occurrence
    prev_m = m_run[...]
    better = chunk_max > prev_m                                    # ties keep earlier
    arg_run[...] = jnp.where(better, chunk_arg, arg_run[...])

    new_m = jnp.maximum(prev_m, chunk_max)
    s_run[...] = (s_run[...] * jnp.exp(prev_m - new_m)
                  + jnp.sum(jnp.exp(lmask - new_m), axis=-1, keepdims=True))
    m_run[...] = new_m
    logsum_run[...] += jnp.sum(jnp.where(valid, logits, 0.0),
                               axis=-1, keepdims=True)
    tgt_logit[...] += jnp.sum(jnp.where(col == tgt, logits, 0.0),
                              axis=-1, keepdims=True)

    @pl.when(j == nj - 1)
    def _():
        lse = m_run[...] + jnp.log(s_run[...])                     # (tn, 1)
        not_pad = jnp.logical_and(tgt != pad_idx, tgt >= 0).astype(jnp.float32)
        nll_ref[...] = (lse - tgt_logit[...]) * not_pad            # -lprobs[target]
        smooth_ref[...] = (vocab * lse - logsum_run[...]) * not_pad  # -sum(lprobs)
        acc_ref[...] = (arg_run[...] == tgt.astype(jnp.float32)
                        ).astype(jnp.float32)                      # argmax == target


def token_decoder_loss(y, tgt_embed_w, tgt_out_flat, *, pad_idx,
                       label_smoothing, tgt_num_tokens):
    """y: (N, D) decoder outputs; tgt_embed_w: (V, D) bf16; tgt_out_flat: (N,)."""
    N, D = y.shape
    V = tgt_embed_w.shape[0]
    tn = TN_LOSS if N >= TN_LOSS else _round_up(N, 8)
    tv = TV if V >= TV else _round_up(V, 8)
    n_pad = _round_up(N, tn)
    v_pad = _round_up(V, tv)

    x = jnp.pad(y, ((0, n_pad - N), (0, 0))) if n_pad != N else y
    w = (jnp.pad(tgt_embed_w, ((0, v_pad - V), (0, 0)))
         if v_pad != V else tgt_embed_w)
    tgt = tgt_out_flat.astype(jnp.int32)
    if n_pad != N:
        tgt = jnp.pad(tgt, (0, n_pad - N), constant_values=-1)
    tgt = tgt.reshape(n_pad, 1)

    nll_r, smooth_r, acc_r = pl.pallas_call(
        functools.partial(_loss_kernel, pad_idx=pad_idx, vocab=V, tv=tv),
        out_shape=(jax.ShapeDtypeStruct((n_pad, 1), jnp.float32),) * 3,
        grid=(n_pad // tn, v_pad // tv),
        in_specs=[
            pl.BlockSpec((tn, D), lambda i, j: (i, 0)),
            pl.BlockSpec((tv, D), lambda i, j: (j, 0)),
            pl.BlockSpec((tn, 1), lambda i, j: (i, 0)),
        ],
        out_specs=(pl.BlockSpec((tn, 1), lambda i, j: (i, 0)),) * 3,
        scratch_shapes=[pltpu.VMEM((tn, 1), jnp.float32) for _ in range(5)],
        compiler_params=_cparams(("parallel", "arbitrary")),
    )(x, w, tgt)

    nll = jnp.sum(nll_r)
    smooth = jnp.sum(smooth_r)
    acc = jnp.sum(acc_r)
    eps = label_smoothing
    loss = (1.0 - eps) * nll + (eps / V) * smooth
    return loss / tgt_num_tokens, acc


# ----------------------------------------------------------------------------
# Model glue (plain JAX: embedding gathers, pos-emb table, mask building)
# ----------------------------------------------------------------------------
def sinusoidal_pos_emb(seq_len, dim):
    half = dim // 2
    freq = jnp.exp(jnp.arange(half, dtype=jnp.float32)
                   * (-math.log(10000.0) / (half - 1)))
    pos = jnp.arange(seq_len, dtype=jnp.float32)[:, None] * freq[None, :]
    return jnp.concatenate([jnp.sin(pos), jnp.cos(pos)], axis=1)


def transformer_layer(x, p, self_key_bias, num_heads, *, causal,
                      memory=None, mem_bias=None):
    """x: (B, T, D) f32 batch-major; post-LayerNorm transformer layer."""
    B, T, D = x.shape
    N = B * T
    x2 = x.reshape(N, D)

    # self-attention: fused QKV projection -> attention -> fused proj+res+LN
    qkv = linear(x2, p["sa_wqkv"], p["sa_bqkv"])                    # (N, 3D) bf16
    a = self_attention(qkv.reshape(B, T, 3 * D), self_key_bias,
                       num_heads=num_heads, causal=causal)          # (B, T, D) bf16
    x2 = proj_residual_ln(a.reshape(N, D), p["sa_wo"], p["sa_bo"], x2,
                          p["attn_ln"])

    # cross-attention (decoder only)
    if memory is not None:
        S = memory.shape[1]
        q = linear(x2, p["ea_wq"], p["ea_bq"])                      # (N, D) bf16
        kv = linear(memory.reshape(B * S, D), p["ea_wkv"], p["ea_bkv"])
        a = cross_attention(q.reshape(B, T, D), kv.reshape(B, S, 2 * D),
                            mem_bias, num_heads=num_heads)
        x2 = proj_residual_ln(a.reshape(N, D), p["ea_wo"], p["ea_bo"], x2,
                              p["ext_ln"])

    # fused FFN (streamed hidden dim) + residual + LN
    x2 = ffn_ln(x2, p["fc1_w"], p["fc1_b"], p["fc2_w"], p["fc2_b"], p["ff_ln"])
    return x2.reshape(B, T, D)


def generator_forward(params, data, *, cfg):
    D, H = cfg["embed_dim"], cfg["num_heads"]
    embed_scale = math.sqrt(D)
    src_bt = data["src_tokens"].T          # (B, S)
    tgt_in_bt = data["tgt_tokens_in"].T    # (B, T)
    tgt_out_bt = data["tgt_tokens_out"].T  # (B, T)
    B, S = src_bt.shape
    T = tgt_in_bt.shape[1]

    # ---------------- Encoder ----------------
    x = (embed_scale * params["src_embed"][src_bt].astype(jnp.float32)
         + sinusoidal_pos_emb(S, D)[None])
    # dropout: eval mode (identity)
    src_key_bias = jnp.where((src_bt == cfg["src_pad"])[:, None, :],
                             NEG_INF, 0.0).astype(jnp.float32)       # (B, 1, S)
    for lp in params["enc_layers"]:
        x = transformer_layer(x, lp, src_key_bias, H, causal=False)
    memory = x

    # ---------------- Decoder ----------------
    y = (embed_scale * params["tgt_embed"][tgt_in_bt].astype(jnp.float32)
         + sinusoidal_pos_emb(T, D)[None])
    tgt_key_bias = jnp.where((tgt_in_bt == cfg["tgt_pad"])[:, None, :],
                             NEG_INF, 0.0).astype(jnp.float32)       # (B, 1, T)
    for lp in params["dec_layers"]:
        y = transformer_layer(y, lp, tgt_key_bias, H, causal=True,
                              memory=memory, mem_bias=src_key_bias)

    # ------------- TokenDecoder (tied projection + loss) -------------
    return token_decoder_loss(
        y.reshape(B * T, D), params["tgt_embed"], tgt_out_bt.reshape(B * T),
        pad_idx=cfg["tgt_pad"], label_smoothing=cfg["label_smoothing"],
        tgt_num_tokens=data["tgt_num_tokens"])


# ----------------------------------------------------------------------------
# Deterministic parameter initialization (bf16 weight slabs, f32 biases/LN)
# ----------------------------------------------------------------------------
def init_params(key, cfg):
    D, F = cfg["embed_dim"], cfg["ff_embed_dim"]
    keys = iter(jax.random.split(key, 256))

    def nrm(shape, std=0.02):
        return (std * jax.random.normal(next(keys), shape, jnp.float32)
                ).astype(MXU_DTYPE)

    def embed(V, pad):
        w = nrm((V, D), D ** -0.5)
        return w.at[pad].set(0.0)

    def ln_p():
        return dict(g=jnp.ones((D,), jnp.float32), b=jnp.zeros((D,), jnp.float32))

    def layer_p(with_external):
        p = dict(
            sa_wqkv=nrm((D, 3 * D)), sa_bqkv=jnp.zeros((3 * D,), jnp.float32),
            sa_wo=nrm((D, D)), sa_bo=jnp.zeros((D,), jnp.float32),
            attn_ln=ln_p(),
            fc1_w=nrm((D, F)), fc1_b=jnp.zeros((F,), jnp.float32),
            fc2_w=nrm((F, D)), fc2_b=jnp.zeros((D,), jnp.float32),
            ff_ln=ln_p(),
        )
        if with_external:
            p.update(
                ea_wq=nrm((D, D)), ea_bq=jnp.zeros((D,), jnp.float32),
                ea_wkv=nrm((D, 2 * D)), ea_bkv=jnp.zeros((2 * D,), jnp.float32),
                ea_wo=nrm((D, D)), ea_bo=jnp.zeros((D,), jnp.float32),
                ext_ln=ln_p(),
            )
        return p

    return dict(
        src_embed=embed(cfg["src_vocab"], cfg["src_pad"]),
        tgt_embed=embed(cfg["tgt_vocab"], cfg["tgt_pad"]),
        enc_layers=[layer_p(False) for _ in range(cfg["enc_layers"])],
        dec_layers=[layer_p(True) for _ in range(cfg["dec_layers"])],
    )


# ----------------------------------------------------------------------------
if __name__ == "__main__":
    cfg = dict(embed_dim=32, ff_embed_dim=64, num_heads=4,
               enc_layers=2, dec_layers=2,
               src_vocab=24, tgt_vocab=24, src_pad=0, tgt_pad=0, bos=1,
               label_smoothing=0.1)

    key = jax.random.PRNGKey(0)
    pk, k1, k2 = jax.random.split(key, 3)
    params = init_params(pk, cfg)

    S, T, B = 8, 8, 2
    src = jax.random.randint(k1, (S, B), 2, cfg["src_vocab"], dtype=jnp.int32)
    src = src.at[-2:, 1].set(cfg["src_pad"])          # pad tail of sequence 1

    tgt_body = jax.random.randint(k2, (T, B), 2, cfg["tgt_vocab"], dtype=jnp.int32)
    tgt_out = tgt_body.at[-2:, 1].set(cfg["tgt_pad"])
    tgt_in = jnp.concatenate(
        [jnp.full((1, B), cfg["bos"], jnp.int32), tgt_out[:-1]], axis=0)

    data = dict(
        src_tokens=src,
        tgt_tokens_in=tgt_in,
        tgt_tokens_out=tgt_out,
        tgt_num_tokens=jnp.sum(tgt_out != cfg["tgt_pad"]).astype(jnp.float32),
    )

    loss, acc = generator_forward(params, data, cfg=cfg)
    jax.block_until_ready((loss, acc))
    assert jnp.isfinite(loss) and jnp.isfinite(acc)
    print("KERNEL_OK")
</pallas_src>

<mosaic_0001>
module attributes {stable_mosaic.version = 11 : i64} {
  func.func @_matmul_kernel(%arg0: i32, %arg1: i32, %arg2: i32, %arg3: memref<16x32xf32, #tpu.memory_space<vmem>>, %arg4: memref<32x96xbf16, #tpu.memory_space<vmem>>, %arg5: memref<1x96xf32, #tpu.memory_space<vmem>>, %arg6: memref<16x96xbf16, #tpu.memory_space<vmem>>, %arg7: memref<16x96xf32, #tpu.memory_space<vmem>>) attributes {dimension_semantics = [#tpu.dimension_semantics<parallel>, #tpu.dimension_semantics<parallel>, #tpu.dimension_semantics<arbitrary>], iteration_bounds = array<i64: 1, 1, 1>, scalar_prefetch = 0 : i64, scratch_operands = 1 : i64, tpu.core_type = #tpu.core_type<tc>, window_params = [{transform_indices = @transform_0, window_bounds = array<i64: 16, 32>}, {transform_indices = @transform_1, window_bounds = array<i64: 32, 96>}, {transform_indices = @transform_2, window_bounds = array<i64: 1, 96>}, {transform_indices = @transform_3, window_bounds = array<i64: 16, 96>}]} {
    %c0_i32 = arith.constant 0 : i32
    %0 = arith.cmpi eq, %arg2, %c0_i32 : i32
    %1 = arith.extui %0 : i1 to i32
    %c0_i32_0 = arith.constant 0 : i32
    %2 = arith.cmpi ne, %1, %c0_i32_0 : i32
    scf.if %2 {
      %cst_10 = arith.constant 0.000000e+00 : f32
      %13 = vector.broadcast %cst_10 : f32 to vector<16x96xf32>
      %c0_11 = arith.constant 0 : index
      %c0_12 = arith.constant 0 : index
      %14 = vector.load %arg7[%c0_11, %c0_12] : memref<16x96xf32, #tpu.memory_space<vmem>>, vector<16x96xf32>
      tpu.vector_store %arg7[%c0_11, %c0_12], %13 {strides = array<i32>} : memref<16x96xf32, #tpu.memory_space<vmem>>, vector<16x96xf32>,
    } else {
    }
    %c0 = arith.constant 0 : index
    %c0_1 = arith.constant 0 : index
    %3 = vector.load %arg7[%c0, %c0_1] : memref<16x96xf32, #tpu.memory_space<vmem>>, vector<16x96xf32>
    %c0_2 = arith.constant 0 : index
    %c0_3 = arith.constant 0 : index
    %4 = vector.load %arg3[%c0_2, %c0_3] : memref<16x32xf32, #tpu.memory_space<vmem>>, vector<16x32xf32>
    %5 = arith.truncf %4 : vector<16x32xf32> to vector<16x32xbf16>
    %c0_4 = arith.constant 0 : index
    %c0_5 = arith.constant 0 : index
    %6 = vector.load %arg4[%c0_4, %c0_5] : memref<32x96xbf16, #tpu.memory_space<vmem>>, vector<32x96xbf16>
    %cst = arith.constant dense<0.000000e+00> : vector<16x96xf32>
    %7 = tpu.matmul %5, %6, %cst {dimension_numbers = #tpu.dot_dimension_numbers<[1], [0], [0], [1], [0, 0, 1, 1], [], []>} : vector<16x32xbf16>, vector<32x96xbf16>, vector<16x96xf32> -> vector<16x96xf32>
    %8 = arith.addf %3, %7 : vector<16x96xf32>
    %c0_6 = arith.constant 0 : index
    %c0_7 = arith.constant 0 : index
    %9 = vector.load %arg7[%c0_6, %c0_7] : memref<16x96xf32, #tpu.memory_space<vmem>>, vector<16x96xf32>
    tpu.vector_store %arg7[%c0_6, %c0_7], %8 {strides = array<i32>} : memref<16x96xf32, #tpu.memory_space<vmem>>, vector<16x96xf32>,
    %c0_i32_8 = arith.constant 0 : i32
    %10 = arith.cmpi eq, %arg2, %c0_i32_8 : i32
    %11 = arith.extui %10 : i1 to i32
    %c0_i32_9 = arith.constant 0 : i32
    %12 = arith.cmpi ne, %11, %c0_i32_9 : i32
    scf.if %12 {
      %c0_10 = arith.constant 0 : index
      %c0_11 = arith.constant 0 : index
      %13 = vector.load %arg7[%c0_10, %c0_11] : memref<16x96xf32, #tpu.memory_space<vmem>>, vector<16x96xf32>
      %c0_12 = arith.constant 0 : index
      %c0_13 = arith.constant 0 : index
      %14 = vector.load %arg5[%c0_12, %c0_13] : memref<1x96xf32, #tpu.memory_space<vmem>>, vector<1x96xf32>
      %15 = vector.broadcast %14 : vector<1x96xf32> to vector<16x96xf32>
      %16 = arith.addf %13, %15 : vector<16x96xf32>
      %17 = arith.truncf %16 : vector<16x96xf32> to vector<16x96xbf16>
      %c0_14 = arith.constant 0 : index
      %c0_15 = arith.constant 0 : index
      %18 = vector.load %arg6[%c0_14, %c0_15] : memref<16x96xbf16, #tpu.memory_space<vmem>>, vector<16x96xbf16>
      tpu.vector_store %arg6[%c0_14, %c0_15], %17 {strides = array<i32>} : memref<16x96xbf16, #tpu.memory_space<vmem>>, vector<16x96xbf16>,
    } else {
    }
    return
  }
  func.func @transform_0(%arg0: i32, %arg1: i32, %arg2: i32) -> (i32, i32) {
    %c0_i32 = arith.constant 0 : i32
    return %arg0, %arg2 : i32, i32
  }
  func.func @transform_1(%arg0: i32, %arg1: i32, %arg2: i32) -> (i32, i32) {
    %c0_i32 = arith.constant 0 : i32
    return %arg2, %arg1 : i32, i32
  }
  func.func @transform_2(%arg0: i32, %arg1: i32, %arg2: i32) -> (i32, i32) {
    %c0_i32 = arith.constant 0 : i32
    %c0_i32_0 = arith.constant 0 : i32
    return %c0_i32, %arg1 : i32, i32
  }
  func.func @transform_3(%arg0: i32, %arg1: i32, %arg2: i32) -> (i32, i32) {
    %c0_i32 = arith.constant 0 : i32
    return %arg0, %arg1 : i32, i32
  }
}

</mosaic_0001>

<llo_original>
// kernel: tpu_custom_call.1
$region0: #{tpu_custom_call.1}
  #allocation0 [shape = 'u32[]', space=smem, size = 0x4, offset = 0x4, fixed_abs, tag = 'smem constant byte address 0x4 - core index']
  #allocation1 [shape = 'u32[144,128]{1,0:T(1,128)}', space=vmem, size = 0x12000, scoped, tag = 'internal scratch']
  #allocation2 [shape = 'f32[16,96]{1,0:T(8,128)}', space=vmem, size = 0x2000, scoped, tag = 'scratch operand']
  %s0 = inlined_call_operand.hbm [shape: f32[16,32], index: 0, kind: input, shape index: {}]
  %s1 = inlined_call_operand.hbm [shape: bf16[32,96], index: 1, kind: input, shape index: {}]
  %s2 = inlined_call_operand.vmem [shape: f32[1,96], index: 2, kind: input, shape index: {}]
  %s3 = inlined_call_operand.hbm [shape: bf16[16,96], index: 3, kind: output, shape index: {}]
  %s4 = sld [smem:[#allocation0]]
  $region38: #{tpu_custom_call.1} parent=0
    _
  %s6 = ssub.s32 1, %s4
  %s7 = scalar_select 0, %s6, %s4
  $region1: #{tpu_custom_call.1} parent=0
    #allocation3 [shape = 'u8[8192]{0}', space=vmem, size = 0x2000, scoped, tag = 'input window, operand 0, single buffered']
    #allocation4 [shape = 's32[1]{0}', space=sflag, size = 0x4, scoped, tag = 'scoped memory for tpu_custom_call.1']
    #allocation5 [shape = 's32[1]{0}', space=sflag, size = 0x4, scoped, tag = 'scoped memory for tpu_custom_call.1']
    #allocation6 [shape = 'u8[8192]{0}', space=vmem, size = 0x2000, scoped, tag = 'input window, operand 1, single buffered']
    #allocation7 [shape = 's32[1]{0}', space=sflag, size = 0x4, scoped, tag = 'scoped memory for tpu_custom_call.1']
    #allocation8 [shape = 'u8[4096]{0}', space=vmem, size = 0x1000, scoped, tag = 'output window, operand 0, single buffered']
    %8 = vsyncpa [#allocation4], 0
    %9 = vsyncpa [#allocation7], 0
    %10 = vsyncpa [#allocation5], 0
    // Predicated region
    $region2: #{tpu_custom_call.1} parent=1 // pred_check
      _
    $region3: #{tpu_custom_call.1} parent=1 // pred_check_branch
      %12 = sbr.rel (0) target = $region5
    $region4: #{tpu_custom_call.1} parent=1 // pred_region
      %s14 = ssub.s32 256, 256
      %15 = vsyncadd [#allocation4], %s14
      %s16 = sshll.u32 [#allocation3], 4
      %s17 = int_to_ptr.vmem [resolvable:$true] %s16
      %22 = dma.hbm_to_vmem [thread:$0]  %s0, 256, %s17, [#allocation4], 128, 128, 8
    $region5: #{tpu_custom_call.1} parent=1 // pred_fallthru
      _
    // Predicated region
    $region6: #{tpu_custom_call.1} parent=1 // pred_check
      _
    $region7: #{tpu_custom_call.1} parent=1 // pred_check_branch
      %24 = sbr.rel (0) target = $region9
    $region8: #{tpu_custom_call.1} parent=1 // pred_region
      %s26 = ssub.s32 256, 256
      %27 = vsyncadd [#allocation7], %s26
      %s28 = sshll.u32 [#allocation6], 4
      %s29 = int_to_ptr.vmem [resolvable:$true] %s28
      %34 = dma.hbm_to_vmem [thread:$0]  %s1, 256, %s29, [#allocation7], 64, 64, 4
    $region9: #{tpu_custom_call.1} parent=1 // pred_fallthru
      _
    // Predicated region
    $region10: #{tpu_custom_call.1} parent=1 // pred_check
      _
    $region11: #{tpu_custom_call.1} parent=1 // pred_check_branch
      %36 = sbr.rel (0) target = $region13
    $region12: #{tpu_custom_call.1} parent=1 // pred_region
      _
    $region13: #{tpu_custom_call.1} parent=1 // pred_fallthru
      _
    // Predicated region
    $region14: #{tpu_custom_call.1} parent=1 // pred_check
      _
    $region15: #{tpu_custom_call.1} parent=1 // pred_check_branch
      %38 = sbr.rel (0) target = $region17
    $region16: #{tpu_custom_call.1} parent=1 // pred_region
      %39 = dma.done [#allocation4], 256
    $region17: #{tpu_custom_call.1} parent=1 // pred_fallthru
      _
    // Predicated region
    $region18: #{tpu_custom_call.1} parent=1 // pred_check
      _
    $region19: #{tpu_custom_call.1} parent=1 // pred_check_branch
      %41 = sbr.rel (0) target = $region21
    $region20: #{tpu_custom_call.1} parent=1 // pred_region
      %42 = dma.done [#allocation7], 256
    $region21: #{tpu_custom_call.1} parent=1 // pred_fallthru
      _
    %p44 = scmp.eq.s32.totalorder 0, 0
    // Predicated region
    $region22: #{tpu_custom_call.1} parent=1 // pred_check
      %p45 = pneg %p44
    $region23: #{tpu_custom_call.1} parent=1 // pred_check_branch
      %47 = sbr.rel (%p45) target = $region25
    $region24: #{tpu_custom_call.1} parent=1 // pred_region
      %vm48 = vcmask 785408
      %49 = vst.msk [vmem:[#allocation2] sm:$0xff] %vm48, 0.0
      %50 = vst.msk [vmem:[#allocation2 + $0x8] sm:$0xff] %vm48, 0.0
    $region25: #{tpu_custom_call.1} parent=1 // pred_fallthru
      _
    %v51 = vld [vmem:[#allocation2] sm:$0xff]
    %v52 = vld [vmem:[#allocation2 + $0x8] sm:$0xff]
    %v53 = vld [vmem:[#allocation3] sm:$0xff]
    %v54 = vld [vmem:[#allocation3 + $0x8] sm:$0xff]
    %v55 = vpack.c.bf16 %v54, %v53
    %v56 = vld [vmem:[#allocation6] sm:$0xf]
    %v57 = vld [vmem:[#allocation6 + $0x4] sm:$0xf]
    %v58 = vld [vmem:[#allocation6 + $0x8] sm:$0xf]
    %v59 = vld [vmem:[#allocation6 + $0xc] sm:$0xf]
    %v64 = vunpack.c.l.b16 %v56
    %v65 = vunpack.c.l.b16 %v57
    %v66 = vunpack.c.l.b16 %v58
    %v67 = vunpack.c.l.b16 %v59
    %v68 = vpack.c.b16 %v65, %v64
    %v69 = vpack.c.b16 %v67, %v66
    %vm72 = vcmask 261120
    %v74 = vsel %vm72, %v55, 0
    %76 = vmatprep.subr.bf16.mxu0 0
    %77 = vmatpush1.bf16.msra.mxu0 0
    %78 = vmatprep.subr.bf16.mxu0 0
    %79 = vmatpush1.bf16.msra.mxu0 0
    %80 = vmatprep.subr.bf16.mxu0 0
    %81 = vmatpush1.bf16.msra.mxu0 0
    %82 = vmatprep.subr.bf16.mxu0 0
    %83 = vmatpush1.bf16.msra.mxu0 0
    %84 = vmatprep.subr.bf16.mxu0 0
    %85 = vmatpush1.bf16.msra.mxu0 0
    %86 = vmatprep.subr.bf16.mxu0 0
    %87 = vmatpush1.bf16.msra.mxu0 0
    %88 = vmatprep.subr.bf16.mxu0 0
    %89 = vmatpush1.bf16.msra.mxu0 %v69
    %90 = vmatprep.subr.bf16.mxu0 0
    %91 = vmatpush1.bf16.msra.mxu0 %v68
    %92 = vmatprep.subr.bf16.mxu0 0
    %93 = vmatpush2.bf16.msra.mxu0 0
    %94 = vmatprep.subr.bf16.mxu0 0
    %95 = vmatpush2.bf16.msra.mxu0 0
    %96 = vmatprep.subr.bf16.mxu0 0
    %97 = vmatpush2.bf16.msra.mxu0 0
    %98 = vmatprep.subr.bf16.mxu0 0
    %99 = vmatpush2.bf16.msra.mxu0 0
    %100 = vmatprep.subr.bf16.mxu0 0
    %101 = vmatpush2.bf16.msra.mxu0 0
    %102 = vmatprep.subr.bf16.mxu0 0
    %103 = vmatpush2.bf16.msra.mxu0 0
    %104 = vmatprep.subr.bf16.mxu0 0
    %105 = vmatpush2.bf16.msra.mxu0 0
    %106 = vmatprep.subr.bf16.mxu0 0
    %107 = vmatpush2.bf16.msra.mxu0 0
    %108 = vmatprep.mubr.bf16.mxu0 0
    %109 = vmatmul.mubr.bf16.gmra.mxu0 %v74
    %v110 = vpop.f32.mrf.mxu0
    %v111 = vadd.f32 0.0, %v110
    %v112 = vpop.f32.mrf.mxu0
    %v113 = vpop.f32.mrf.mxu0
    %v114 = vadd.f32 0.0, %v113
    %v115 = vpop.f32.mrf.mxu0
    %116 = vdwg.mxu0
    %v117 = vadd.f32 %v51, %v111
    %v118 = vadd.f32 %v52, %v114
    %vm119 = vcmask 785408
    %120 = vst.msk [vmem:[#allocation2] sm:$0xff] %vm119, %v117
    %121 = vst.msk [vmem:[#allocation2 + $0x8] sm:$0xff] %vm119, %v118
    // Predicated region
    $region26: #{tpu_custom_call.1} parent=1 // pred_check
      %p122 = pneg %p44
    $region27: #{tpu_custom_call.1} parent=1 // pred_check_branch
      %124 = sbr.rel (%p122) target = $region29
    $region28: #{tpu_custom_call.1} parent=1 // pred_region
      %v125 = vld [vmem:[#allocation2] sm:$0xff]
      %v126 = vld [vmem:[#allocation2 + $0x8] sm:$0xff]
      %v127 = vld [vmem:[%s2] sm:$0x1]
      %v129 = vlaneseq
      %v130 = vshrl.u32 %v129, 7
      %v131 = vsub.s32 0, %v130
      %v132 = vrot.slane %v127, %v131
      %v134 = vadd.f32 %v125, %v132
      %v135 = vadd.f32 %v126, %v132
      %v136 = vpack.c.bf16 %v135, %v134
      %v138 = vunpack.c.l.b16 %v136
      %v139 = vunpack.c.h.b16 %v136
      %v140 = vpack.c.b16 %v138, %v138
      %v141 = vpack.c.b16 %v139, %v139
      %vm144 = vcmask 781312
      %145 = vst.msk [vmem:[#allocation8] sm:$0xf] %vm144, %v140
      %146 = vst.msk [vmem:[#allocation8 + $0x4] sm:$0xf] %vm144, %v141
    $region29: #{tpu_custom_call.1} parent=1 // pred_fallthru
      _
    // Predicated region
    $region30: #{tpu_custom_call.1} parent=1 // pred_check
      _
    $region31: #{tpu_custom_call.1} parent=1 // pred_check_branch
      %148 = sbr.rel (0) target = $region33
    $region32: #{tpu_custom_call.1} parent=1 // pred_region
      %s150 = ssub.s32 128, 128
      %151 = vsyncadd [#allocation5], %s150
      %s152 = sshll.u32 [#allocation8], 4
      %s153 = int_to_ptr.vmem [resolvable:$true] %s152
      %158 = dma.vmem_to_hbm [thread:$0]  %s153, 128, %s3, [#allocation5], 64, 64, 4
    $region33: #{tpu_custom_call.1} parent=1 // pred_fallthru
      _
    // Predicated region
    $region34: #{tpu_custom_call.1} parent=1 // pred_check
      _
    $region35: #{tpu_custom_call.1} parent=1 // pred_check_branch
      %160 = sbr.rel (0) target = $region37
    $region36: #{tpu_custom_call.1} parent=1 // pred_region
      %161 = dma.done [#allocation5], 128
    $region37: #{tpu_custom_call.1} parent=1 // pred_fallthru
      _
    %162 = vsyncpa [#allocation4], 1
    %163 = vsyncpa [#allocation7], 1
    %164 = vsyncpa [#allocation5], 1

</llo_original>
